<compile_context>
chip_gen: v5e
topology: v5e:2x2
jax: 0.10.0
libtpu: 0.0.40
codegen_flags: <defaults>
</compile_context>

<pallas_src>
import jax
import jax.numpy as jnp
from jax.experimental import pallas as pl
from jax.experimental.pallas import tpu as pltpu

EPS = 1e-5

_VMEM_STREAM_BUDGET = 24 * 1024 * 1024   # double-buffered x/y/mask/out bytes per step
_VMEM_LIMIT_BYTES = 32 * 1024 * 1024     # explicit scoped-VMEM limit (safe on v5e/v6e/v7x)
_MAX_BATCH_PACK = 16                     # cap static unroll over packed batch elements


def _cond_proj_kernel_masked(x_ref, y_ref, m_ref, w_ref, scale_ref, bias_ref, o_ref):
    # x_ref, y_ref, o_ref: (bN, C, tn)   m_ref: (bN, 1, tn) int8
    # w_ref: (C, C)   scale_ref, bias_ref: (C, 1)
    w = w_ref[...]
    scale = scale_ref[...]                                           # (C, 1)
    bias = bias_ref[...]                                             # (C, 1)
    for b in range(x_ref.shape[0]):                                  # static unroll (bN small)
        x = x_ref[b].astype(jnp.float32)                             # (C, tn)
        # 1x1x1 conv == per-voxel channel matmul on the MXU (lane-dense output)
        xw = jnp.dot(w, x, preferred_element_type=jnp.float32)       # (C, tn)
        y = y_ref[b].astype(jnp.float32)                             # (C, tn)
        m = m_ref[b].astype(jnp.float32)                             # (1, tn)
        # conditional skip, arithmetic select (avoids sublane-replicated where)
        v = y + m * (xw - y)                                         # bcast over C sublanes
        # BatchNorm3d (eval) pre-folded to per-channel scale/bias, then ReLU
        o_ref[b] = jnp.maximum(v * scale + bias, 0.0).astype(o_ref.dtype)


def _cond_proj_kernel_nomask(x_ref, w_ref, bias_ref, o_ref):
    # condition=False: BN scale already folded into w -> fused matmul + bias + relu
    w = w_ref[...]
    bias = bias_ref[...]                                             # (C, 1)
    for b in range(x_ref.shape[0]):
        x = x_ref[b].astype(jnp.float32)                             # (C, tn)
        xw = jnp.dot(w, x, preferred_element_type=jnp.float32)       # (C, tn)
        o_ref[b] = jnp.maximum(xw + bias, 0.0).astype(o_ref.dtype)


def _round_up(v, m):
    return ((v + m - 1) // m) * m


def _cdiv(a, b):
    return -(-a // b)


def conditional_projection(x, y, mask, weight, bn_params, *, condition=True,
                           tn_max=32768, eps=EPS):
    """
    Args:
      x, y:      (N, C, D, H, W) float32/bf16  (encoder / decoder features, NCDHW)
      mask:      (N, 1, D, H, W) bool
      weight:    (C, C) conv1x1x1 weight, PyTorch layout [out_ch, in_ch] (bias=False)
      bn_params: (4, C) float32 rows = [running_mean, running_var, gamma, beta]
    Returns:
      (N, C, D, H, W), dtype = promote(x, y) when condition else x.dtype
    """
    N, C, D, H, W = x.shape
    S = D * H * W

    # NCDHW -> (N, C, S): free reshape, channels stay on sublanes
    x3 = x.reshape(N, C, S)
    y3 = y.reshape(N, C, S)

    out_dtype = jnp.promote_types(x.dtype, y.dtype) if condition else x.dtype

    # Fold BN (eval) into per-channel scale/bias
    mean, var, gamma, beta = bn_params
    scale = (gamma * jax.lax.rsqrt(var + eps)).astype(jnp.float32)      # (C,)
    bias = (beta - mean * scale).astype(jnp.float32)                    # (C,)
    scale2 = scale.reshape(C, 1)
    bias2 = bias.reshape(C, 1)
    w = weight.astype(jnp.float32)                                      # (C, C)

    # ---------- tile sizing: maximize bytes per grid step (HBM-bound) ----------
    S_pad = _round_up(S, 128)
    bytes_per_pos = C * (x3.dtype.itemsize + y3.dtype.itemsize
                         + jnp.dtype(out_dtype).itemsize)
    if condition:
        bytes_per_pos += 1                                              # int8 mask
    # positions/step such that double-buffered streams stay within the VMEM budget
    pos_budget = max(128, (_VMEM_STREAM_BUDGET // (2 * bytes_per_pos)) // 128 * 128)
    tn = int(min(tn_max, S_pad, pos_budget))
    tn = max(128, (tn // 128) * 128)

    # when one tile covers the whole volume, pack batch elements to keep bytes/step up
    bN = 1
    if tn >= S_pad:
        bN = int(max(1, min(N, pos_budget // tn, _MAX_BATCH_PACK)))

    # megacore (v7x = 2 TCs/chip): ensure at least 2 grid steps whenever possible
    if _cdiv(N, bN) * _cdiv(S, tn) < 2:
        if S > 128:
            tn = _round_up(_cdiv(S, 2), 128)    # split the spatial axis into 2 tiles
        elif bN > 1:
            bN = _cdiv(bN, 2)                   # split the packed-batch axis

    grid = (pl.cdiv(N, bN), pl.cdiv(S, tn))     # cdiv -> masked tail tiles

    xy_spec = pl.BlockSpec((bN, C, tn), lambda b, j: (b, 0, j))
    w_spec = pl.BlockSpec((C, C), lambda b, j: (0, 0))
    vec_spec = pl.BlockSpec((C, 1), lambda b, j: (0, 0))
    out_spec = pl.BlockSpec((bN, C, tn), lambda b, j: (b, 0, j))

    compiler_params = pltpu.CompilerParams(
        dimension_semantics=("parallel", "parallel"),
        vmem_limit_bytes=_VMEM_LIMIT_BYTES)

    if condition:
        m3 = mask.astype(jnp.int8).reshape(N, 1, S)                     # 1 byte/voxel
        m_spec = pl.BlockSpec((bN, 1, tn), lambda b, j: (b, 0, j))
        out3 = pl.pallas_call(
            _cond_proj_kernel_masked,
            out_shape=jax.ShapeDtypeStruct((N, C, S), out_dtype),
            grid=grid,
            in_specs=[xy_spec, xy_spec, m_spec, w_spec, vec_spec, vec_spec],
            out_specs=out_spec,
            compiler_params=compiler_params,
        )(x3, y3, m3, w, scale2, bias2)
    else:
        w_eff = scale2 * w                      # fold BN scale into the conv weight
        out3 = pl.pallas_call(
            _cond_proj_kernel_nomask,
            out_shape=jax.ShapeDtypeStruct((N, C, S), out_dtype),
            grid=grid,
            in_specs=[xy_spec, w_spec, vec_spec],
            out_specs=out_spec,
            compiler_params=compiler_params,
        )(x3, w_eff, bias2)

    return out3.reshape(N, C, D, H, W)


def _reference(x, y, mask, weight, bn_params, condition=True):
    # pure-JAX reference mirroring the PyTorch forward (BN in eval mode)
    xw = jnp.einsum('ncdhw,oc->nodhw', x, weight)
    v = jnp.where(mask, xw, y) if condition else xw
    mean, var, gamma, beta = (bn_params[i].reshape(1, -1, 1, 1, 1) for i in range(4))
    v = (v - mean) / jnp.sqrt(var + EPS) * gamma + beta
    return jnp.maximum(v, 0.0)


if __name__ == "__main__":
    key = jax.random.PRNGKey(0)
    C = 8
    # (N, D, H, W): S=256 is lane-aligned; S=300 exercises the masked tail tile.
    for (N, D, H, W) in [(2, 4, 8, 8), (2, 5, 6, 10)]:
        kx, ky, km, kw, kb = jax.random.split(jax.random.fold_in(key, D * H * W), 5)
        x = jax.random.normal(kx, (N, C, D, H, W), jnp.float32)
        y = jax.random.normal(ky, (N, C, D, H, W), jnp.float32)
        mask = jax.random.bernoulli(km, 0.5, (N, 1, D, H, W))

        # deterministic synthetic parameters (conv1x1x1 has no bias in the module)
        weight = 0.1 * jax.random.normal(kw, (C, C), jnp.float32)
        running_mean = 0.05 * jnp.arange(C, dtype=jnp.float32)
        running_var = 1.0 + 0.1 * jnp.arange(C, dtype=jnp.float32)
        gamma = 1.0 + 0.05 * jax.random.normal(kb, (C,), jnp.float32)
        beta = 0.1 * jnp.ones((C,), jnp.float32)
        bn_params = jnp.stack([running_mean, running_var, gamma, beta], axis=0)  # (4, C)

        for condition in (True, False):
            out = jax.block_until_ready(conditional_projection(
                x, y, mask, weight, bn_params, condition=condition))
            ref = _reference(x, y, mask, weight, bn_params, condition=condition)
            assert out.shape == (N, C, D, H, W)
            assert jnp.allclose(out, ref, atol=1e-4, rtol=1e-4), (
                f"mismatch (condition={condition}, S={D * H * W})")

    print("KERNEL_OK")
</pallas_src>

<mosaic_0001>
module attributes {stable_mosaic.version = 11 : i64} {
  func.func @_cond_proj_kernel_masked(%arg0: i32, %arg1: i32, %arg2: memref<2x8x128xf32, #tpu.memory_space<vmem>>, %arg3: memref<2x8x128xf32, #tpu.memory_space<vmem>>, %arg4: memref<2x1x128xi8, #tpu.memory_space<vmem>>, %arg5: memref<8x8xf32, #tpu.memory_space<vmem>>, %arg6: memref<8x1xf32, #tpu.memory_space<vmem>>, %arg7: memref<8x1xf32, #tpu.memory_space<vmem>>, %arg8: memref<2x8x128xf32, #tpu.memory_space<vmem>>) attributes {dimension_semantics = [#tpu.dimension_semantics<parallel>, #tpu.dimension_semantics<parallel>], iteration_bounds = array<i64: 1, 2>, scalar_prefetch = 0 : i64, scratch_operands = 0 : i64, tpu.core_type = #tpu.core_type<tc>, window_params = [{transform_indices = @transform_0, window_bounds = array<i64: 2, 8, 128>}, {transform_indices = @transform_1, window_bounds = array<i64: 2, 8, 128>}, {transform_indices = @transform_2, window_bounds = array<i64: 2, 1, 128>}, {pipeline_mode = #tpu.pipeline_mode<synchronous>, transform_indices = @transform_3, window_bounds = array<i64: 8, 8>}, {pipeline_mode = #tpu.pipeline_mode<synchronous>, transform_indices = @transform_4, window_bounds = array<i64: 8, 1>}, {pipeline_mode = #tpu.pipeline_mode<synchronous>, transform_indices = @transform_5, window_bounds = array<i64: 8, 1>}, {transform_indices = @transform_6, window_bounds = array<i64: 2, 8, 128>}]} {
    %c0 = arith.constant 0 : index
    %c0_0 = arith.constant 0 : index
    %0 = vector.load %arg5[%c0, %c0_0] : memref<8x8xf32, #tpu.memory_space<vmem>>, vector<8x8xf32>
    %c0_1 = arith.constant 0 : index
    %c0_2 = arith.constant 0 : index
    %1 = vector.load %arg6[%c0_1, %c0_2] : memref<8x1xf32, #tpu.memory_space<vmem>>, vector<8x1xf32>
    %c0_3 = arith.constant 0 : index
    %c0_4 = arith.constant 0 : index
    %2 = vector.load %arg7[%c0_3, %c0_4] : memref<8x1xf32, #tpu.memory_space<vmem>>, vector<8x1xf32>
    %c0_5 = arith.constant 0 : index
    %c0_6 = arith.constant 0 : index
    %c0_7 = arith.constant 0 : index
    %3 = vector.load %arg2[%c0_5, %c0_6, %c0_7] : memref<2x8x128xf32, #tpu.memory_space<vmem>>, vector<1x8x128xf32>
    %4 = vector.shape_cast %3 : vector<1x8x128xf32> to vector<8x128xf32>
    %cst = arith.constant dense<0.000000e+00> : vector<8x128xf32>
    %5 = tpu.matmul %0, %4, %cst {dimension_numbers = #tpu.dot_dimension_numbers<[1], [0], [0], [1], [0, 0, 1, 1], [], []>} : vector<8x8xf32>, vector<8x128xf32>, vector<8x128xf32> -> vector<8x128xf32>
    %c0_8 = arith.constant 0 : index
    %c0_9 = arith.constant 0 : index
    %c0_10 = arith.constant 0 : index
    %6 = vector.load %arg3[%c0_8, %c0_9, %c0_10] : memref<2x8x128xf32, #tpu.memory_space<vmem>>, vector<1x8x128xf32>
    %7 = vector.shape_cast %6 : vector<1x8x128xf32> to vector<8x128xf32>
    %c0_11 = arith.constant 0 : index
    %c0_12 = arith.constant 0 : index
    %c0_13 = arith.constant 0 : index
    %8 = vector.load %arg4[%c0_11, %c0_12, %c0_13] : memref<2x1x128xi8, #tpu.memory_space<vmem>>, vector<1x1x128xi8>
    %9 = vector.shape_cast %8 : vector<1x1x128xi8> to vector<1x128xi8>
    %10 = arith.sitofp %9 : vector<1x128xi8> to vector<1x128xf32>
    %11 = arith.subf %5, %7 : vector<8x128xf32>
    %12 = vector.broadcast %10 : vector<1x128xf32> to vector<8x128xf32>
    %13 = arith.mulf %12, %11 : vector<8x128xf32>
    %14 = arith.addf %7, %13 : vector<8x128xf32>
    %15 = vector.broadcast %1 : vector<8x1xf32> to vector<8x128xf32>
    %16 = arith.mulf %14, %15 : vector<8x128xf32>
    %17 = vector.broadcast %2 : vector<8x1xf32> to vector<8x128xf32>
    %18 = arith.addf %16, %17 : vector<8x128xf32>
    %cst_14 = arith.constant 0.000000e+00 : f32
    %19 = vector.broadcast %cst_14 : f32 to vector<8x128xf32>
    %20 = arith.maximumf %18, %19 : vector<8x128xf32>
    %c0_15 = arith.constant 0 : index
    %c0_16 = arith.constant 0 : index
    %c0_17 = arith.constant 0 : index
    %21 = vector.load %arg8[%c0_15, %c0_16, %c0_17] : memref<2x8x128xf32, #tpu.memory_space<vmem>>, vector<1x8x128xf32>
    %22 = vector.shape_cast %21 : vector<1x8x128xf32> to vector<8x128xf32>
    %23 = vector.shape_cast %20 : vector<8x128xf32> to vector<1x8x128xf32>
    tpu.vector_store %arg8[%c0_15, %c0_16, %c0_17], %23 {strides = array<i32>} : memref<2x8x128xf32, #tpu.memory_space<vmem>>, vector<1x8x128xf32>,
    %c1 = arith.constant 1 : index
    %c0_18 = arith.constant 0 : index
    %c0_19 = arith.constant 0 : index
    %24 = vector.load %arg2[%c1, %c0_18, %c0_19] : memref<2x8x128xf32, #tpu.memory_space<vmem>>, vector<1x8x128xf32>
    %25 = vector.shape_cast %24 : vector<1x8x128xf32> to vector<8x128xf32>
    %cst_20 = arith.constant dense<0.000000e+00> : vector<8x128xf32>
    %26 = tpu.matmul %0, %25, %cst_20 {dimension_numbers = #tpu.dot_dimension_numbers<[1], [0], [0], [1], [0, 0, 1, 1], [], []>} : vector<8x8xf32>, vector<8x128xf32>, vector<8x128xf32> -> vector<8x128xf32>
    %c1_21 = arith.constant 1 : index
    %c0_22 = arith.constant 0 : index
    %c0_23 = arith.constant 0 : index
    %27 = vector.load %arg3[%c1_21, %c0_22, %c0_23] : memref<2x8x128xf32, #tpu.memory_space<vmem>>, vector<1x8x128xf32>
    %28 = vector.shape_cast %27 : vector<1x8x128xf32> to vector<8x128xf32>
    %c1_24 = arith.constant 1 : index
    %c0_25 = arith.constant 0 : index
    %c0_26 = arith.constant 0 : index
    %29 = vector.load %arg4[%c1_24, %c0_25, %c0_26] : memref<2x1x128xi8, #tpu.memory_space<vmem>>, vector<1x1x128xi8>
    %30 = vector.shape_cast %29 : vector<1x1x128xi8> to vector<1x128xi8>
    %31 = arith.sitofp %30 : vector<1x128xi8> to vector<1x128xf32>
    %32 = arith.subf %26, %28 : vector<8x128xf32>
    %33 = vector.broadcast %31 : vector<1x128xf32> to vector<8x128xf32>
    %34 = arith.mulf %33, %32 : vector<8x128xf32>
    %35 = arith.addf %28, %34 : vector<8x128xf32>
    %36 = vector.broadcast %1 : vector<8x1xf32> to vector<8x128xf32>
    %37 = arith.mulf %35, %36 : vector<8x128xf32>
    %38 = vector.broadcast %2 : vector<8x1xf32> to vector<8x128xf32>
    %39 = arith.addf %37, %38 : vector<8x128xf32>
    %cst_27 = arith.constant 0.000000e+00 : f32
    %40 = vector.broadcast %cst_27 : f32 to vector<8x128xf32>
    %41 = arith.maximumf %39, %40 : vector<8x128xf32>
    %c1_28 = arith.constant 1 : index
    %c0_29 = arith.constant 0 : index
    %c0_30 = arith.constant 0 : index
    %42 = vector.load %arg8[%c1_28, %c0_29, %c0_30] : memref<2x8x128xf32, #tpu.memory_space<vmem>>, vector<1x8x128xf32>
    %43 = vector.shape_cast %42 : vector<1x8x128xf32> to vector<8x128xf32>
    %44 = vector.shape_cast %41 : vector<8x128xf32> to vector<1x8x128xf32>
    tpu.vector_store %arg8[%c1_28, %c0_29, %c0_30], %44 {strides = array<i32>} : memref<2x8x128xf32, #tpu.memory_space<vmem>>, vector<1x8x128xf32>,
    return
  }
  func.func @transform_0(%arg0: i32, %arg1: i32) -> (i32, i32, i32) {
    %c0_i32 = arith.constant 0 : i32
    %c0_i32_0 = arith.constant 0 : i32
    return %arg0, %c0_i32, %arg1 : i32, i32, i32
  }
  func.func @transform_1(%arg0: i32, %arg1: i32) -> (i32, i32, i32) {
    %c0_i32 = arith.constant 0 : i32
    %c0_i32_0 = arith.constant 0 : i32
    return %arg0, %c0_i32, %arg1 : i32, i32, i32
  }
  func.func @transform_2(%arg0: i32, %arg1: i32) -> (i32, i32, i32) {
    %c0_i32 = arith.constant 0 : i32
    %c0_i32_0 = arith.constant 0 : i32
    return %arg0, %c0_i32, %arg1 : i32, i32, i32
  }
  func.func @transform_3(%arg0: i32, %arg1: i32) -> (i32, i32) {
    %c0_i32 = arith.constant 0 : i32
    %c0_i32_0 = arith.constant 0 : i32
    %c0_i32_1 = arith.constant 0 : i32
    return %c0_i32, %c0_i32_0 : i32, i32
  }
  func.func @transform_4(%arg0: i32, %arg1: i32) -> (i32, i32) {
    %c0_i32 = arith.constant 0 : i32
    %c0_i32_0 = arith.constant 0 : i32
    %c0_i32_1 = arith.constant 0 : i32
    return %c0_i32, %c0_i32_0 : i32, i32
  }
  func.func @transform_5(%arg0: i32, %arg1: i32) -> (i32, i32) {
    %c0_i32 = arith.constant 0 : i32
    %c0_i32_0 = arith.constant 0 : i32
    %c0_i32_1 = arith.constant 0 : i32
    return %c0_i32, %c0_i32_0 : i32, i32
  }
  func.func @transform_6(%arg0: i32, %arg1: i32) -> (i32, i32, i32) {
    %c0_i32 = arith.constant 0 : i32
    %c0_i32_0 = arith.constant 0 : i32
    return %arg0, %c0_i32, %arg1 : i32, i32, i32
  }
}

</mosaic_0001>

<llo_original>
// kernel: tpu_custom_call.1
$region0: #{tpu_custom_call.1}
  #allocation0 [shape = 'u32[]', space=smem, size = 0x4, offset = 0x4, fixed_abs, tag = 'smem constant byte address 0x4 - core index']
  #allocation1 [shape = 'u32[72,128]{1,0:T(1,128)}', space=vmem, size = 0x9000, scoped, tag = 'internal scratch']
  %s0 = inlined_call_operand.hbm [shape: f32[2,8,256], index: 0, kind: input, shape index: {}]
  %s1 = inlined_call_operand.hbm [shape: f32[2,8,256], index: 1, kind: input, shape index: {}]
  %s2 = inlined_call_operand.vmem [shape: s8[2,1,256], index: 2, kind: input, shape index: {}]
  %s3 = inlined_call_operand.vmem [shape: f32[8,8], index: 3, kind: input, shape index: {}]
  %s4 = inlined_call_operand.vmem [shape: f32[8,1], index: 4, kind: input, shape index: {}]
  %s5 = inlined_call_operand.vmem [shape: f32[8,1], index: 5, kind: input, shape index: {}]
  %s6 = inlined_call_operand.hbm [shape: f32[2,8,256], index: 6, kind: output, shape index: {}]
  %s7 = sld [smem:[#allocation0]]
  $region99: #{tpu_custom_call.1} parent=0
    _
  %s9 = ssub.s32 1, %s7
  %s10 = scalar_select 0, %s9, %s7
  $region1: #{tpu_custom_call.1} parent=0
    #allocation2 [shape = 'u8[16384]{0}', space=vmem, size = 0x4000, scoped, tag = 'input window, operand 0']
    #allocation3 [shape = 's32[2]{0}', space=sflag, size = 0x8, scoped, tag = 'scoped memory for tpu_custom_call.1']
    #allocation4 [shape = 's32[2]{0}', space=sflag, size = 0x8, scoped, tag = 'scoped memory for tpu_custom_call.1']
    #allocation5 [shape = 'u8[16384]{0}', space=vmem, size = 0x4000, scoped, tag = 'input window, operand 1']
    #allocation6 [shape = 's32[2]{0}', space=sflag, size = 0x8, scoped, tag = 'scoped memory for tpu_custom_call.1']
    #allocation7 [shape = 'u8[2048]{0}', space=vmem, size = 0x800, scoped, tag = 'input window, operand 2']
    #allocation8 [shape = 'u8[16384]{0}', space=vmem, size = 0x4000, scoped, tag = 'output window, operand 0']
    %11 = vsyncpa [#allocation3], 0
    %s12 = scalar_lea.sflag [#allocation3], 1
    %13 = vsyncpa %s12, 0
    %14 = vsyncpa [#allocation6], 0
    %s15 = scalar_lea.sflag [#allocation6], 1
    %16 = vsyncpa %s15, 0
    %17 = vsyncpa [#allocation4], 0
    %s18 = scalar_lea.sflag [#allocation4], 1
    %19 = vsyncpa %s18, 0
    loop: start=0, step=1, limit=4
    $region2: #{tpu_custom_call.1} parent=1 // loop_pre_header
      _
    $region3: #{tpu_custom_call.1} parent=1 // loop_header
      %s21 = sphi 0, %s25
      %p22 = scmp.ge.s32.totalorder %s21, 4
      %s28 = sphi 0, %s40
      %s29 = sphi 0, %s36
      %s30 = sphi 0, %s28
      %s31 = sphi 0, %s29
      %s32 = sphi 0, %s30
      %s33 = sphi 0, %s31
      %s45 = sphi 0, %s47
      %s48 = sphi 0, %s45
      %s49 = sphi 0, %s48
      %s65 = sphi 0, %s49
      %s73 = sphi 0, %s75
      %s76 = sphi 0, %s73
      %s77 = sphi 0, %s76
      %s93 = sphi 0, %s77
      %s101 = sphi 0, %s103
      %s104 = sphi 0, %s101
      %s105 = sphi 0, %s104
      %s121 = sphi 0, %s105
      %s125 = sphi 0, %s125
      %s127 = sphi 0, %s125
      %s128 = sphi 0, %s127
      %s142 = sphi 0, %s128
      %s146 = sphi 0, %s146
      %s148 = sphi 0, %s146
      %s149 = sphi 0, %s148
      %s163 = sphi 0, %s149
      %s167 = sphi 0, %s167
      %s169 = sphi 0, %s167
      %s170 = sphi 0, %s169
      %s184 = sphi 0, %s170
      %s192 = sphi 0, %s194
      %s195 = sphi 0, %s192
      %s196 = sphi 0, %s195
      %s212 = sphi 0, %s196
    $region4: #{tpu_custom_call.1} parent=1 // loop_header_branch
      %24 = sbr.rel (%p22) target = $region8
    $region5: #{tpu_custom_call.1} parent=1 // loop_body
      %s26 = ssub.s32 %s21, 1
      %s27 = ssub.s32 %s21, 2
      %s34 = sadd.s32 1, %s29
      %p35 = scmp.ge.s32.totalorder %s34, 2
      %s36 = scalar_select %p35, 0, %s34
      %s37 = sadd.s32 1, %s28
      %s38 = scalar_select %p35, %s37, %s28
      %p39 = scmp.ge.s32.totalorder %s38, 1
      %s40 = scalar_select %p39, 0, %s38
      %s41 = ssub.s32 %s28, %s40
      %s42 = ssub.s32 %s29, %s36
      %s43 = sor.u32 %s41, %s42
      %p44 = scmp.eq.s32.totalorder %s43, 0
      %s46 = sadd.s32 %s45, 1
      %s47 = scalar_select %p44, %s45, %s46
      %p50 = pneg %p44
      %p51 = scmp.eq.s32.totalorder %s21, 1
      %p52 = por %p50, %p51
      %p53 = scmp.ne.s32.totalorder %s45, %s48
      %p54 = scmp.eq.s32.totalorder %s21, 0
      %p55 = por %p53, %p54
      %p56 = scmp.ne.s32.totalorder %s45, %s48
      %p57 = scmp.eq.s32.totalorder %s26, 1
      %p58 = por %p56, %p57
      %p59 = scmp.ne.s32.totalorder %s48, %s49
      %p60 = scmp.eq.s32.totalorder %s26, 0
      %p61 = por %p59, %p60
      %p62 = scmp.ne.s32.totalorder %s48, %s49
      %p63 = scmp.eq.s32.totalorder %s27, 1
      %p64 = por %p62, %p63
      %p66 = scmp.ne.s32.totalorder %s49, %s65
      %p67 = scmp.eq.s32.totalorder %s27, 0
      %p68 = por %p66, %p67
      %s69 = ssub.s32 %s28, %s40
      %s70 = ssub.s32 %s29, %s36
      %s71 = sor.u32 %s69, %s70
      %p72 = scmp.eq.s32.totalorder %s71, 0
      %s74 = sadd.s32 %s73, 1
      %s75 = scalar_select %p72, %s73, %s74
      %p78 = pneg %p72
      %p79 = scmp.eq.s32.totalorder %s21, 1
      %p80 = por %p78, %p79
      %p81 = scmp.ne.s32.totalorder %s73, %s76
      %p82 = scmp.eq.s32.totalorder %s21, 0
      %p83 = por %p81, %p82
      %p84 = scmp.ne.s32.totalorder %s73, %s76
      %p85 = scmp.eq.s32.totalorder %s26, 1
      %p86 = por %p84, %p85
      %p87 = scmp.ne.s32.totalorder %s76, %s77
      %p88 = scmp.eq.s32.totalorder %s26, 0
      %p89 = por %p87, %p88
      %p90 = scmp.ne.s32.totalorder %s76, %s77
      %p91 = scmp.eq.s32.totalorder %s27, 1
      %p92 = por %p90, %p91
      %p94 = scmp.ne.s32.totalorder %s77, %s93
      %p95 = scmp.eq.s32.totalorder %s27, 0
      %p96 = por %p94, %p95
      %s97 = ssub.s32 %s28, %s40
      %s98 = ssub.s32 %s29, %s36
      %s99 = sor.u32 %s97, %s98
      %p100 = scmp.eq.s32.totalorder %s99, 0
      %s102 = sadd.s32 %s101, 1
      %s103 = scalar_select %p100, %s101, %s102
      %p106 = pneg %p100
      %p107 = scmp.eq.s32.totalorder %s21, 1
      %p108 = por %p106, %p107
      %p109 = scmp.ne.s32.totalorder %s101, %s104
      %p110 = scmp.eq.s32.totalorder %s21, 0
      %p111 = por %p109, %p110
      %p112 = scmp.ne.s32.totalorder %s101, %s104
      %p113 = scmp.eq.s32.totalorder %s26, 1
      %p114 = por %p112, %p113
      %p115 = scmp.ne.s32.totalorder %s104, %s105
      %p116 = scmp.eq.s32.totalorder %s26, 0
      %p117 = por %p115, %p116
      %p118 = scmp.ne.s32.totalorder %s104, %s105
      %p119 = scmp.eq.s32.totalorder %s27, 1
      %p120 = por %p118, %p119
      %p122 = scmp.ne.s32.totalorder %s105, %s121
      %p123 = scmp.eq.s32.totalorder %s27, 0
      %p124 = por %p122, %p123
      %s126 = sadd.s32 %s125, 1
      %p129 = scmp.eq.s32.totalorder %s21, 1
      %p130 = scmp.ne.s32.totalorder %s125, %s127
      %p131 = scmp.eq.s32.totalorder %s21, 0
      %p132 = por %p130, %p131
      %p133 = scmp.ne.s32.totalorder %s125, %s127
      %p134 = scmp.eq.s32.totalorder %s26, 1
      %p135 = por %p133, %p134
      %p136 = scmp.ne.s32.totalorder %s127, %s128
      %p137 = scmp.eq.s32.totalorder %s26, 0
      %p138 = por %p136, %p137
      %p139 = scmp.ne.s32.totalorder %s127, %s128
      %p140 = scmp.eq.s32.totalorder %s27, 1
      %p141 = por %p139, %p140
      %p143 = scmp.ne.s32.totalorder %s128, %s142
      %p144 = scmp.eq.s32.totalorder %s27, 0
      %p145 = por %p143, %p144
      %s147 = sadd.s32 %s146, 1
      %p150 = scmp.eq.s32.totalorder %s21, 1
      %p151 = scmp.ne.s32.totalorder %s146, %s148
      %p152 = scmp.eq.s32.totalorder %s21, 0
      %p153 = por %p151, %p152
      %p154 = scmp.ne.s32.totalorder %s146, %s148
      %p155 = scmp.eq.s32.totalorder %s26, 1
      %p156 = por %p154, %p155
      %p157 = scmp.ne.s32.totalorder %s148, %s149
      %p158 = scmp.eq.s32.totalorder %s26, 0
      %p159 = por %p157, %p158
      %p160 = scmp.ne.s32.totalorder %s148, %s149
      %p161 = scmp.eq.s32.totalorder %s27, 1
      %p162 = por %p160, %p161
      %p164 = scmp.ne.s32.totalorder %s149, %s163
      %p165 = scmp.eq.s32.totalorder %s27, 0
      %p166 = por %p164, %p165
      %s168 = sadd.s32 %s167, 1
      %p171 = scmp.eq.s32.totalorder %s21, 1
      %p172 = scmp.ne.s32.totalorder %s167, %s169
      %p173 = scmp.eq.s32.totalorder %s21, 0
      %p174 = por %p172, %p173
      %p175 = scmp.ne.s32.totalorder %s167, %s169
      %p176 = scmp.eq.s32.totalorder %s26, 1
      %p177 = por %p175, %p176
      %p178 = scmp.ne.s32.totalorder %s169, %s170
      %p179 = scmp.eq.s32.totalorder %s26, 0
      %p180 = por %p178, %p179
      %p181 = scmp.ne.s32.totalorder %s169, %s170
      %p182 = scmp.eq.s32.totalorder %s27, 1
      %p183 = por %p181, %p182
      %p185 = scmp.ne.s32.totalorder %s170, %s184
      %p186 = scmp.eq.s32.totalorder %s27, 0
      %p187 = por %p185, %p186
      %s188 = ssub.s32 %s28, %s40
      %s189 = ssub.s32 %s29, %s36
      %s190 = sor.u32 %s188, %s189
      %p191 = scmp.eq.s32.totalorder %s190, 0
      %s193 = sadd.s32 %s192, 1
      %s194 = scalar_select %p191, %s192, %s193
      %p197 = pneg %p191
      %p198 = scmp.eq.s32.totalorder %s21, 1
      %p199 = por %p197, %p198
      %p200 = scmp.ne.s32.totalorder %s192, %s195
      %p201 = scmp.eq.s32.totalorder %s21, 0
      %p202 = por %p200, %p201
      %p203 = scmp.ne.s32.totalorder %s192, %s195
      %p204 = scmp.eq.s32.totalorder %s26, 1
      %p205 = por %p203, %p204
      %p206 = scmp.ne.s32.totalorder %s195, %s196
      %p207 = scmp.eq.s32.totalorder %s26, 0
      %p208 = por %p206, %p207
      %p209 = scmp.ne.s32.totalorder %s195, %s196
      %p210 = scmp.eq.s32.totalorder %s27, 1
      %p211 = por %p209, %p210
      %p213 = scmp.ne.s32.totalorder %s196, %s212
      %p214 = scmp.eq.s32.totalorder %s27, 0
      %p215 = por %p213, %p214
      %p216 = scmp.le.s32.totalorder 1, %s21
      %p217 = scmp.lt.s32.totalorder %s21, 3
      %p218 = pnand %p216, %p217
      %p219 = pneg %p218
      // Predicated region
      $region9: #{tpu_custom_call.1} parent=5 // pred_check
        _
      $region10: #{tpu_custom_call.1} parent=5 // pred_check_branch
        %221 = sbr.rel (%p218) target = $region12
      $region11: #{tpu_custom_call.1} parent=5 // pred_region
        %s222 = ssub.s32 %s21, 1
        // Predicated region
        $region13: #{tpu_custom_call.1} parent=11 // pred_check
          %p223 = pneg %p138
        $region14: #{tpu_custom_call.1} parent=11 // pred_check_branch
          %225 = sbr.rel (%p223) target = $region16
        $region15: #{tpu_custom_call.1} parent=11 // pred_region
          _
        $region16: #{tpu_custom_call.1} parent=11 // pred_fallthru
          _
        // Predicated region
        $region17: #{tpu_custom_call.1} parent=11 // pred_check
          %p226 = pneg %p159
        $region18: #{tpu_custom_call.1} parent=11 // pred_check_branch
          %228 = sbr.rel (%p226) target = $region20
        $region19: #{tpu_custom_call.1} parent=11 // pred_region
          _
        $region20: #{tpu_custom_call.1} parent=11 // pred_fallthru
          _
        // Predicated region
        $region21: #{tpu_custom_call.1} parent=11 // pred_check
          %p229 = pneg %p180
        $region22: #{tpu_custom_call.1} parent=11 // pred_check_branch
          %231 = sbr.rel (%p229) target = $region24
        $region23: #{tpu_custom_call.1} parent=11 // pred_region
          _
        $region24: #{tpu_custom_call.1} parent=11 // pred_fallthru
          _
      $region12: #{tpu_custom_call.1} parent=5 // pred_fallthru
        _
      %p232 = scmp.lt.s32.totalorder %s21, 2
      // Predicated region
      $region25: #{tpu_custom_call.1} parent=5 // pred_check
        %p233 = pneg %p232
      $region26: #{tpu_custom_call.1} parent=5 // pred_check_branch
        %235 = sbr.rel (%p233) target = $region28
      $region27: #{tpu_custom_call.1} parent=5 // pred_region
        // Predicated region
        $region29: #{tpu_custom_call.1} parent=27 // pred_check
          %p236 = pneg %p55
        $region30: #{tpu_custom_call.1} parent=27 // pred_check_branch
          %238 = sbr.rel (%p236) target = $region32
        $region31: #{tpu_custom_call.1} parent=27 // pred_region
          %s239 = sand.u32 %s45, 1
          %s240 = scalar_lea.sflag [#allocation3], %s239
          %s241 = sand.u32 %s45, 1
          %s242 = smul.addr %s241, 16
          %s243 = scalar_lea.vmem [#allocation2], %s242
          %s244 = smul.u32 2, %s28
          %246 = vsyncadd %s240, 0
          %s247 = smul.addr %s244, 2
          %s248 = sadd.s32 %s29, %s247
          %s249 = smul.addr %s248, 8
          %s250 = scalar_lea.hbm %s0, %s249
          %s251 = sshll.u32 %s250, 4
          %s252 = int_to_ptr.hbm [resolvable:$true] %s251
          %s253 = sshll.u32 %s243, 4
          %s254 = int_to_ptr.vmem [resolvable:$true] %s253
          %259 = dma.hbm_to_vmem [thread:$0]  %s252, 256, %s254, %s240, 256, 128, 8
        $region32: #{tpu_custom_call.1} parent=27 // pred_fallthru
          _
        // Predicated region
        $region33: #{tpu_custom_call.1} parent=27 // pred_check
          %p260 = pneg %p83
        $region34: #{tpu_custom_call.1} parent=27 // pred_check_branch
          %262 = sbr.rel (%p260) target = $region36
        $region35: #{tpu_custom_call.1} parent=27 // pred_region
          %s263 = sand.u32 %s73, 1
          %s264 = scalar_lea.sflag [#allocation6], %s263
          %s265 = sand.u32 %s73, 1
          %s266 = smul.addr %s265, 16
          %s267 = scalar_lea.vmem [#allocation5], %s266
          %s268 = smul.u32 2, %s28
          %270 = vsyncadd %s264, 0
          %s271 = smul.addr %s268, 2
          %s272 = sadd.s32 %s29, %s271
          %s273 = smul.addr %s272, 8
          %s274 = scalar_lea.hbm %s1, %s273
          %s275 = sshll.u32 %s274, 4
          %s276 = int_to_ptr.hbm [resolvable:$true] %s275
          %s277 = sshll.u32 %s267, 4
          %s278 = int_to_ptr.vmem [resolvable:$true] %s277
          %283 = dma.hbm_to_vmem [thread:$0]  %s276, 256, %s278, %s264, 256, 128, 8
        $region36: #{tpu_custom_call.1} parent=27 // pred_fallthru
          _
        // Predicated region
        $region37: #{tpu_custom_call.1} parent=27 // pred_check
          %p284 = pneg %p111
        $region38: #{tpu_custom_call.1} parent=27 // pred_check_branch
          %286 = sbr.rel (%p284) target = $region40
        $region39: #{tpu_custom_call.1} parent=27 // pred_region
          %s287 = sand.u32 %s101, 1
          %s288 = sand.u32 %s101, 1
          %s289 = smul.addr %s288, 2
          %s290 = scalar_lea.vmem [#allocation7], %s289
          %s291 = smul.u32 2, %s28
          %s292 = smul.addr %s291, 2
          %s293 = sadd.s32 %s29, %s292
          %s294 = scalar_lea.vmem %s2, %s293
          // Predicated region
          $region41: #{tpu_custom_call.1} parent=39 // pred_check
            _
          $region42: #{tpu_custom_call.1} parent=39 // pred_check_branch
            %296 = sbr.rel (0) target = $region44
          $region43: #{tpu_custom_call.1} parent=39 // pred_region
            // Predicated region
            $region45: #{tpu_custom_call.1} parent=43 // pred_check
              _
            $region46: #{tpu_custom_call.1} parent=43 // pred_check_branch
              %298 = sbr.rel target = $region48
            $region47: #{tpu_custom_call.1} parent=43 // pred_region
              // Predicated region
              $region60: #{tpu_custom_call.1} parent=47 // pred_check
                _
              $region61: #{tpu_custom_call.1} parent=47 // pred_check_branch
                %316 = sbr.rel (0) target = $region63
              $region62: #{tpu_custom_call.1} parent=47 // pred_region
                %s318 = ssub.s32 2, 1
                loop: start=0, step=1, limit=1
                $region64: #{tpu_custom_call.1} parent=62 // loop_pre_header
                  _
                $region65: #{tpu_custom_call.1} parent=62 // loop_header
                  %s320 = sphi 0, %s324
                  %p321 = scmp.ge.s32.totalorder %s320, 1
                  %s325 = sphi %s294, %s294
                  %s326 = sphi %s290, %s290
                $region66: #{tpu_custom_call.1} parent=62 // loop_header_branch
                  %323 = sbr.rel (%p321) target = $region70
                $region67: #{tpu_custom_call.1} parent=62 // loop_body
                  %v327 = vld [vmem:[%s325] sm:%s318]
                  %328 = vst [vmem:[%s326] sm:%s318] %v327
                  %v329 = vld [vmem:[%s325 + $0x2] sm:%s318]
                  %330 = vst [vmem:[%s326 + $0x1] sm:%s318] %v329
                $region68: #{tpu_custom_call.1} parent=62 // loop_footer
                  %s324 = sadd.s32 1, %s320
                $region69: #{tpu_custom_call.1} parent=62 // loop_footer_branch
                  %319 = sbr.rel target = $region65
                $region70: #{tpu_custom_call.1} parent=62 // loop_exit
                  _
              $region63: #{tpu_custom_call.1} parent=47 // pred_fallthru
                _
            $region48: #{tpu_custom_call.1} parent=43 // pred_fallthru
              _
            // Predicated region
            $region49: #{tpu_custom_call.1} parent=43 // pred_check
              _
            $region50: #{tpu_custom_call.1} parent=43 // pred_check_branch
              %300 = sbr.rel (0) target = $region52
            $region51: #{tpu_custom_call.1} parent=43 // pred_region
              %s302 = ssub.s32 2, 1
              loop: start=0, step=1, limit=1
              $region53: #{tpu_custom_call.1} parent=51 // loop_pre_header
                _
              $region54: #{tpu_custom_call.1} parent=51 // loop_header
                %s304 = sphi 0, %s308
                %p305 = scmp.ge.s32.totalorder %s304, 1
                %s309 = sphi %s294, %s294
                %s310 = sphi %s290, %s290
              $region55: #{tpu_custom_call.1} parent=51 // loop_header_branch
                %307 = sbr.rel (%p305) target = $region59
              $region56: #{tpu_custom_call.1} parent=51 // loop_body
                %v311 = vld [vmem:[%s309] sm:%s302]
                %312 = vst [vmem:[%s310] sm:%s302] %v311
                %v313 = vld [vmem:[%s309 + $0x2] sm:%s302]
                %314 = vst [vmem:[%s310 + $0x1] sm:%s302] %v313
              $region57: #{tpu_custom_call.1} parent=51 // loop_footer
                %s308 = sadd.s32 1, %s304
              $region58: #{tpu_custom_call.1} parent=51 // loop_footer_branch
                %303 = sbr.rel target = $region54
              $region59: #{tpu_custom_call.1} parent=51 // loop_exit
                _
            $region52: #{tpu_custom_call.1} parent=43 // pred_fallthru
              _
          $region44: #{tpu_custom_call.1} parent=39 // pred_fallthru
            _
          %331 = vnop
        $region40: #{tpu_custom_call.1} parent=27 // pred_fallthru
          _
      $region28: #{tpu_custom_call.1} parent=5 // pred_fallthru
        _
      %p332 = scmp.le.s32.totalorder 1, %s21
      %p333 = scmp.lt.s32.totalorder %s21, 3
      %p334 = pnand %p332, %p333
      %p335 = pneg %p334
      // Predicated region
      $region71: #{tpu_custom_call.1} parent=5 // pred_check
        _
      $region72: #{tpu_custom_call.1} parent=5 // pred_check_branch
        %337 = sbr.rel (%p334) target = $region74
      $region73: #{tpu_custom_call.1} parent=5 // pred_region
        %s338 = ssub.s32 %s21, 1
        %s339 = sand.u32 %s48, 1
        %s340 = scalar_lea.sflag [#allocation3], %s339
        %s341 = sand.u32 %s48, 1
        %s342 = smul.addr %s341, 16
        %s343 = scalar_lea.vmem [#allocation2], %s342
        // Predicated region
        $region75: #{tpu_custom_call.1} parent=73 // pred_check
          %p344 = pneg %p61
        $region76: #{tpu_custom_call.1} parent=73 // pred_check_branch
          %346 = sbr.rel (%p344) target = $region78
        $region77: #{tpu_custom_call.1} parent=73 // pred_region
          %348 = dma.done %s340, 256
        $region78: #{tpu_custom_call.1} parent=73 // pred_fallthru
          _
        %s349 = sand.u32 %s76, 1
        %s350 = scalar_lea.sflag [#allocation6], %s349
        %s351 = sand.u32 %s76, 1
        %s352 = smul.addr %s351, 16
        %s353 = scalar_lea.vmem [#allocation5], %s352
        // Predicated region
        $region79: #{tpu_custom_call.1} parent=73 // pred_check
          %p354 = pneg %p89
        $region80: #{tpu_custom_call.1} parent=73 // pred_check_branch
          %356 = sbr.rel (%p354) target = $region82
        $region81: #{tpu_custom_call.1} parent=73 // pred_region
          %358 = dma.done %s350, 256
        $region82: #{tpu_custom_call.1} parent=73 // pred_fallthru
          _
        %s359 = sand.u32 %s104, 1
        %s360 = sand.u32 %s104, 1
        %s361 = smul.addr %s360, 2
        %s362 = scalar_lea.vmem [#allocation7], %s361
        // Predicated region
        $region83: #{tpu_custom_call.1} parent=73 // pred_check
          %p363 = pneg %p117
        $region84: #{tpu_custom_call.1} parent=73 // pred_check_branch
          %365 = sbr.rel (%p363) target = $region86
        $region85: #{tpu_custom_call.1} parent=73 // pred_region
          _
        $region86: #{tpu_custom_call.1} parent=73 // pred_fallthru
          _
        %s366 = sand.u32 %s48, 1
        %s367 = scalar_lea.sflag [#allocation3], %s366
        %s368 = sand.u32 %s48, 1
        %s369 = smul.addr %s368, 16
        %s370 = scalar_lea.vmem [#allocation2], %s369
        %p371 = pneg %p61
        %p372 = pneg %p58
        %s373 = sand.u32 %s76, 1
        %s374 = scalar_lea.sflag [#allocation6], %s373
        %s375 = sand.u32 %s76, 1
        %s376 = smul.addr %s375, 16
        %s377 = scalar_lea.vmem [#allocation5], %s376
        %p378 = pneg %p89
        %p379 = pneg %p86
        %s380 = sand.u32 %s104, 1
        %s381 = sand.u32 %s104, 1
        %s382 = smul.addr %s381, 2
        %s383 = scalar_lea.vmem [#allocation7], %s382
        %p384 = pneg %p117
        %p385 = pneg %p114
        %p386 = pneg %p138
        %p387 = pneg %p135
        %p388 = pneg %p159
        %p389 = pneg %p156
        %p390 = pneg %p180
        %p391 = pneg %p177
        %p392 = pneg %p208
        %p393 = pneg %p205
        %s394 = sand.u32 %s195, 1
        %s395 = scalar_lea.sflag [#allocation4], %s394
        %s396 = sand.u32 %s195, 1
        %s397 = smul.addr %s396, 16
        %s398 = scalar_lea.vmem [#allocation8], %s397
        %s399 = smul.u32 2, %s30
        %s400 = smul.u32 2, %s30
        %s401 = smul.u32 2, %s30
        %s402 = smul.u32 2, %s30
        %v403 = vld [vmem:[%s3] sm:$0xff]
        %v404 = vld [vmem:[%s4] sm:$0xff]
        %v405 = vld [vmem:[%s5] sm:$0xff]
        %v406 = vld [vmem:[%s343] sm:$0xff]
        %vm407 = vcmask 64512
        %v409 = vsel %vm407, %v403, 0
        %411 = vmatpush.msra.mxu0 0.0
        %412 = vmatpush.msra.mxu0 0.0
        %413 = vmatpush.msra.mxu0 0.0
        %414 = vmatpush.msra.mxu0 0.0
        %415 = vmatpush.msra.mxu0 0.0
        %416 = vmatpush.msra.mxu0 0.0
        %417 = vmatpush.msra.mxu0 0.0
        %418 = vmatpush.msra.mxu0 0.0
        %419 = vmatpush.msra.mxu0 0.0
        %420 = vmatpush.msra.mxu0 0.0
        %421 = vmatpush.msra.mxu0 0.0
        %422 = vmatpush.msra.mxu0 0.0
        %423 = vmatpush.msra.mxu0 0.0
        %424 = vmatpush.msra.mxu0 0.0
        %425 = vmatpush.msra.mxu0 0.0
        %426 = vmatpush.msra.mxu0 %v406
        %427 = vmatmul.f32.gmra.mxu0 %v409
        %v428 = vpop.f32.mrf.mxu0
        %v429 = vadd.f32 0.0, %v428
        %430 = vdwg.mxu0
        %v431 = vld [vmem:[%s353] sm:$0xff]
        %v432 = vld [vmem:[%s362] sm:$0x1]
        %v433 = vunpack.c.0.s8 %v432
        %v434 = vcvt.s32.f32 %v433
        %v435 = vsub.f32 %v429, %v431
        %v436 = vperm.slane %v434, 0
        %v437 = vmul.f32 %v436, %v435
        %v438 = vadd.f32 %v431, %v437
        %440 = vset.pattern.permute.xlu0 0
        %441 = vperm.xlu0 %440, %v404
        %v442 = vpop.permute.xlu0 %441
        %v444 = vmul.f32 %v438, %v442
        %446 = vset.pattern.permute.xlu0 0
        %447 = vperm.xlu0 %446, %v405
        %v448 = vpop.permute.xlu0 %447
        %v450 = vadd.f32 %v444, %v448
        %v451 = vmax.f32 %v450, 0.0
        %452 = vst [vmem:[%s398] sm:$0xff] %v451
        %s453 = scalar_lea.vmem %s343, 8 [#allocation2]
        %v454 = vld [vmem:[%s453] sm:$0xff]
        %455 = vmatpush.msra.mxu0 0.0
        %456 = vmatpush.msra.mxu0 0.0
        %457 = vmatpush.msra.mxu0 0.0
        %458 = vmatpush.msra.mxu0 0.0
        %459 = vmatpush.msra.mxu0 0.0
        %460 = vmatpush.msra.mxu0 0.0
        %461 = vmatpush.msra.mxu0 0.0
        %462 = vmatpush.msra.mxu0 0.0
        %463 = vmatpush.msra.mxu0 0.0
        %464 = vmatpush.msra.mxu0 0.0
        %465 = vmatpush.msra.mxu0 0.0
        %466 = vmatpush.msra.mxu0 0.0
        %467 = vmatpush.msra.mxu0 0.0
        %468 = vmatpush.msra.mxu0 0.0
        %469 = vmatpush.msra.mxu0 0.0
        %470 = vmatpush.msra.mxu0 %v454
        %471 = vmatmul.f32.gmra.mxu0 %v409
        %v472 = vpop.f32.mrf.mxu0
        %v473 = vadd.f32 0.0, %v472
        %474 = vdwg.mxu0
        %s475 = scalar_lea.vmem %s353, 8 [#allocation5]
        %v476 = vld [vmem:[%s475] sm:$0xff]
        %s477 = scalar_lea.vmem %s362, 1 [#allocation7]
        %v478 = vld [vmem:[%s477] sm:$0x1]
        %v479 = vunpack.c.0.s8 %v478
        %v480 = vcvt.s32.f32 %v479
        %v481 = vsub.f32 %v473, %v476
        %v482 = vperm.slane %v480, 0
        %v483 = vmul.f32 %v482, %v481
        %v484 = vadd.f32 %v476, %v483
        %v485 = vmul.f32 %v484, %v442
        %v486 = vadd.f32 %v485, %v448
        %v487 = vmax.f32 %v486, 0.0
        %s488 = scalar_lea.vmem %s398, 8 [#allocation8]
        %489 = vst [vmem:[%s488] sm:$0xff] %v487
        %s490 = sand.u32 %s195, 1
        %s491 = scalar_lea.sflag [#allocation4], %s490
        %s492 = sand.u32 %s195, 1
        %s493 = smul.addr %s492, 16
        %s494 = scalar_lea.vmem [#allocation8], %s493
        // Predicated region
        $region87: #{tpu_custom_call.1} parent=73 // pred_check
          %p495 = pneg %p205
        $region88: #{tpu_custom_call.1} parent=73 // pred_check_branch
          %497 = sbr.rel (%p495) target = $region90
        $region89: #{tpu_custom_call.1} parent=73 // pred_region
          %s498 = smul.u32 2, %s30
          %500 = vsyncadd %s491, 0
          %s501 = smul.addr %s498, 2
          %s502 = sadd.s32 %s31, %s501
          %s503 = smul.addr %s502, 8
          %s504 = scalar_lea.hbm %s6, %s503
          %s505 = sshll.u32 %s494, 4
          %s506 = int_to_ptr.vmem [resolvable:$true] %s505
          %s507 = sshll.u32 %s504, 4
          %s508 = int_to_ptr.hbm [resolvable:$true] %s507
          %513 = dma.vmem_to_hbm [thread:$0]  %s506, 256, %s508, %s491, 128, 256, 8
        $region90: #{tpu_custom_call.1} parent=73 // pred_fallthru
          _
      $region74: #{tpu_custom_call.1} parent=5 // pred_fallthru
        _
      %p514 = scmp.le.s32.totalorder 2, %s21
      // Predicated region
      $region91: #{tpu_custom_call.1} parent=5 // pred_check
        %p515 = pneg %p514
      $region92: #{tpu_custom_call.1} parent=5 // pred_check_branch
        %517 = sbr.rel (%p515) target = $region94
      $region93: #{tpu_custom_call.1} parent=5 // pred_region
        %s518 = ssub.s32 %s21, 2
        // Predicated region
        $region95: #{tpu_custom_call.1} parent=93 // pred_check
          %p519 = pneg %p211
        $region96: #{tpu_custom_call.1} parent=93 // pred_check_branch
          %521 = sbr.rel (%p519) target = $region98
        $region97: #{tpu_custom_call.1} parent=93 // pred_region
          %s522 = sand.u32 %s196, 1
          %s523 = scalar_lea.sflag [#allocation4], %s522
          %s524 = sand.u32 %s196, 1
          %s525 = smul.addr %s524, 16
          %s526 = scalar_lea.vmem [#allocation8], %s525
          %528 = dma.done %s523, 256
        $region98: #{tpu_custom_call.1} parent=93 // pred_fallthru
          _
      $region94: #{tpu_custom_call.1} parent=5 // pred_fallthru
        _
    $region6: #{tpu_custom_call.1} parent=1 // loop_footer
      %s25 = sadd.s32 1, %s21
    $region7: #{tpu_custom_call.1} parent=1 // loop_footer_branch
      %20 = sbr.rel target = $region3
    $region8: #{tpu_custom_call.1} parent=1 // loop_exit
      _
    %529 = vsyncpa [#allocation3], 1
    %s530 = scalar_lea.sflag [#allocation3], 1
    %531 = vsyncpa %s530, 1
    %532 = vsyncpa [#allocation6], 1
    %s533 = scalar_lea.sflag [#allocation6], 1
    %534 = vsyncpa %s533, 1
    %535 = vsyncpa [#allocation4], 1
    %s536 = scalar_lea.sflag [#allocation4], 1
    %537 = vsyncpa %s536, 1

</llo_original>
